<compile_context>
chip_gen: v5e
topology: v5e:2x2
jax: 0.10.0
libtpu: 0.0.40
codegen_flags: <defaults>
</compile_context>

<pallas_src>
import jax
import jax.numpy as jnp
from jax.experimental import pallas as pl
from jax.experimental.pallas import tpu as pltpu


_MXU_DTYPE = jnp.bfloat16      # matmul-operand / HBM-streaming dtype
_ACC_DTYPE = jnp.float32       # accumulation / bias / tanh dtype


def _round_up(x, m):
    return ((x + m - 1) // m) * m


def _pad_axis(a, axis, target):
    pad = target - a.shape[axis]
    if pad == 0:
        return a
    widths = [(0, 0)] * a.ndim
    widths[axis] = (0, pad)
    return jnp.pad(a, widths)


# ---------------------------------------------------------------------------
# Kernel
# ---------------------------------------------------------------------------
def _two_input_mlp_kernel(x_ref,                       # (2*TB, Ep) bf16: [e1 tile; e2 tile]
                          w1_ref, b1_ref,              # (Ep, Hp) bf16, (1, Hp) f32
                          w2_ref, b2_ref,              # (Hp, Hp) bf16, (1, Hp) f32
                          w3a_ref, w3b_ref, b3_ref,    # (Hp, Hp) bf16 x2, (1, Hp) f32
                          w4_ref, b4_ref,              # (Hp, Tp) bf16, (1, Tp) f32
                          out_ref):                    # (TB, Tp) bf16
    tb = x_ref.shape[0] // 2

    # h1 / h2 are shared between the two streams; the wrapper delivers the two
    # embedding tiles already row-stacked, so each layer is a single MXU
    # weight push (no in-kernel concatenate).
    h = jnp.tanh(jnp.dot(x_ref[...], w1_ref[...],
                         preferred_element_type=_ACC_DTYPE) + b1_ref[...])
    h = jnp.tanh(jnp.dot(h.astype(_MXU_DTYPE), w2_ref[...],
                         preferred_element_type=_ACC_DTYPE) + b2_ref[...])

    # Static, sublane-aligned split back into the two streams (TB % 16 == 0).
    o1 = h[:tb].astype(_MXU_DTYPE)                     # (TB, Hp)
    o2 = h[tb:].astype(_MXU_DTYPE)                     # (TB, Hp)

    # h3(cat([o1, o2], dim=1)) == o1 @ W3[:H] + o2 @ W3[H:] + b3
    o = jnp.tanh(
        jnp.dot(o1, w3a_ref[...], preferred_element_type=_ACC_DTYPE)
        + jnp.dot(o2, w3b_ref[...], preferred_element_type=_ACC_DTYPE)
        + b3_ref[...])

    out_ref[...] = (jnp.dot(o.astype(_MXU_DTYPE), w4_ref[...],
                            preferred_element_type=_ACC_DTYPE)
                    + b4_ref[...]).astype(out_ref.dtype)


# ---------------------------------------------------------------------------
# One-time parameter preparation (pad + cast, outside the hot path)
# ---------------------------------------------------------------------------
def prepare_params(params):
    w1, b1 = params["w1"], params["b1"]                # (E, H), (1, H)
    w2, b2 = params["w2"], params["b2"]                # (H, H), (1, H)
    w3, b3 = params["w3"], params["b3"]                # (2H, H), (1, H)
    w4, b4 = params["w4"], params["b4"]                # (H, T), (1, T)

    E, H = w1.shape
    T = w4.shape[1]
    Hp = _round_up(H, 128)                             # lane-dense hidden dim
    Tp = _round_up(T, 128)                             # lane-dense output dim
    Ep = _round_up(E, 128) if E >= 128 else E          # only pad E when large

    f32 = jnp.float32
    prepared = dict(
        embedding=params["embedding"].astype(f32),     # (V, E) f32 lookup table
        w1=_pad_axis(_pad_axis(w1, 0, Ep), 1, Hp).astype(_MXU_DTYPE),
        b1=_pad_axis(b1, 1, Hp).astype(f32),
        w2=_pad_axis(_pad_axis(w2, 0, Hp), 1, Hp).astype(_MXU_DTYPE),
        b2=_pad_axis(b2, 1, Hp).astype(f32),
        # concat([o1, o2], dim=1) @ W3 == o1 @ W3[:H] + o2 @ W3[H:]
        w3a=_pad_axis(_pad_axis(w3[:H], 0, Hp), 1, Hp).astype(_MXU_DTYPE),
        w3b=_pad_axis(_pad_axis(w3[H:], 0, Hp), 1, Hp).astype(_MXU_DTYPE),
        b3=_pad_axis(b3, 1, Hp).astype(f32),
        w4=_pad_axis(_pad_axis(w4, 0, Hp), 1, Tp).astype(_MXU_DTYPE),
        b4=_pad_axis(b4, 1, Tp).astype(f32),
        dims=dict(E=E, H=H, T=T, Ep=Ep, Hp=Hp, Tp=Tp),
    )
    return prepared


# ---------------------------------------------------------------------------
# Forward wrapper
# ---------------------------------------------------------------------------
def two_inputs_mlp_forward(x1, x2, prepared):
    """Forward pass matching TwoInputsMLPClassifier.forward.

    x1: (B, S1) int32 token ids, x2: (B, S2) int32 token ids.
    Returns (B, n_target) float32 logits.
    """
    dims = prepared["dims"]
    T = dims["T"]
    Ep, Hp, Tp = dims["Ep"], dims["Hp"], dims["Tp"]

    # TODO(synk): the embedding gather + CBOW mean stays in XLA glue
    # (data-dependent gather); the kernel streams only (B, Ep) per input.
    emb = prepared["embedding"]
    e1 = jnp.mean(jnp.take(emb, x1, axis=0), axis=1)   # (B, E) f32
    e2 = jnp.mean(jnp.take(emb, x2, axis=0), axis=1)   # (B, E) f32
    B = e1.shape[0]

    # --- batch tiling ------------------------------------------------------
    # TB multiple of 16 (bf16 sublane pair), ~ceil(B/2) so n_tiles >= 2 when
    # B allows it (v7x 2-TC split), capped at 512 and shrunk if the
    # double-buffered footprint would blow a conservative 64 MiB/TC budget.
    weight_keys = ("w1", "b1", "w2", "b2", "w3a", "w3b", "b3", "w4", "b4")
    weight_bytes = sum(int(prepared[k].size) * prepared[k].dtype.itemsize
                       for k in weight_keys)
    budget = 48 << 20                                  # headroom under v7x 64 MiB

    def _vmem_need(tb):
        tiles = 2 * (2 * tb * Ep + tb * Tp) * 2        # dbl-buffered bf16 in/out tiles
        interm = 4 * (2 * tb) * Hp * 4                 # f32 intermediates
        return tiles + 2 * weight_bytes + interm       # resident weights dbl-buffered

    TB = min(512, max(16, _round_up(-(-B // 2), 16)))
    while TB > 16 and _vmem_need(TB) > budget:
        TB = max(16, _round_up(TB // 2, 16))
    Bp = _round_up(B, TB)
    n_tiles = Bp // TB

    # --- stacked input layout ----------------------------------------------
    # Each grid step wants [e1 tile; e2 tile] as one (2*TB, Ep) slab; build
    # that layout here so there is no in-kernel concatenate.
    def _prep_stream(e):
        e = _pad_axis(_pad_axis(e, 0, Bp), 1, Ep).astype(_MXU_DTYPE)
        return e.reshape(n_tiles, TB, Ep)

    e12 = jnp.concatenate([_prep_stream(e1), _prep_stream(e2)], axis=1)
    e12 = e12.reshape(n_tiles * 2 * TB, Ep)            # (2*Bp, Ep) bf16

    weights = tuple(prepared[k] for k in weight_keys)

    def _resident(a):
        nd = a.ndim
        # Constant index_map -> weights stay resident in VMEM across the grid.
        return pl.BlockSpec(a.shape, lambda i, _nd=nd: (0,) * _nd)

    in_specs = ([pl.BlockSpec((2 * TB, Ep), lambda i: (i, 0))]   # stacked e1/e2
                + [_resident(a) for a in weights])

    flops = (2 * (2 * Bp) * Ep * Hp            # h1 on stacked rows
             + 2 * (2 * Bp) * Hp * Hp          # h2 on stacked rows
             + 2 * Bp * (2 * Hp) * Hp          # h3 (split concat)
             + 2 * Bp * Hp * Tp)               # h2target
    transcendentals = 2 * (2 * Bp) * Hp + Bp * Hp      # tanh count
    bytes_accessed = (2 * (2 * Bp) * Ep        # bf16 stacked embeddings in
                      + 2 * Bp * Tp            # bf16 logits out
                      + weight_bytes)

    vmem_limit = int(min(64 << 20, max(32 << 20, _vmem_need(TB) + (8 << 20))))

    out = pl.pallas_call(
        _two_input_mlp_kernel,
        out_shape=jax.ShapeDtypeStruct((Bp, Tp), _MXU_DTYPE),
        grid=(n_tiles,),
        in_specs=in_specs,
        out_specs=pl.BlockSpec((TB, Tp), lambda i: (i, 0)),
        compiler_params=pltpu.CompilerParams(
            dimension_semantics=("parallel",),         # batch tiles shard on v7x 2 TCs
            vmem_limit_bytes=vmem_limit),
        cost_estimate=pl.CostEstimate(
            flops=flops,
            transcendentals=transcendentals,
            bytes_accessed=bytes_accessed),
    )(e12, *weights)

    return out[:B, :T].astype(jnp.float32)


# ---------------------------------------------------------------------------
# Params + pure-JAX reference
# ---------------------------------------------------------------------------
def init_params(key, n_vocab, embedding_dim, hidden_dim, n_target):
    """Deterministic parameter init (PyTorch-Linear-like uniform fan-in)."""
    ks = jax.random.split(key, 9)

    def linear(kw, kb, fan_in, fan_out):
        bound = 1.0 / jnp.sqrt(jnp.float32(fan_in))
        w = jax.random.uniform(kw, (fan_in, fan_out), jnp.float32, -bound, bound)
        b = jax.random.uniform(kb, (1, fan_out), jnp.float32, -bound, bound)
        return w, b

    embedding = jax.random.normal(ks[0], (n_vocab, embedding_dim), jnp.float32)
    w1, b1 = linear(ks[1], ks[2], embedding_dim, hidden_dim)
    w2, b2 = linear(ks[3], ks[4], hidden_dim, hidden_dim)
    w3, b3 = linear(ks[5], ks[6], 2 * hidden_dim, hidden_dim)
    w4, b4 = linear(ks[7], ks[8], hidden_dim, n_target)
    return dict(embedding=embedding, w1=w1, b1=b1, w2=w2, b2=b2,
                w3=w3, b3=b3, w4=w4, b4=b4)


def reference_forward(x1, x2, params):
    """Pure-JAX f32 reference mirroring the PyTorch forward exactly."""
    emb = params["embedding"]
    e1 = jnp.mean(jnp.take(emb, x1, axis=0), axis=1)
    e2 = jnp.mean(jnp.take(emb, x2, axis=0), axis=1)
    o1 = jnp.tanh(e1 @ params["w1"] + params["b1"])
    o2 = jnp.tanh(e2 @ params["w1"] + params["b1"])
    o1 = jnp.tanh(o1 @ params["w2"] + params["b2"])
    o2 = jnp.tanh(o2 @ params["w2"] + params["b2"])
    o = jnp.concatenate([o1, o2], axis=1)
    o = jnp.tanh(o @ params["w3"] + params["b3"])
    return o @ params["w4"] + params["b4"]


if __name__ == "__main__":
    n_vocab, embedding_dim, hidden_dim, n_target = 50, 32, 32, 4
    B, S1, S2 = 2, 8, 16

    key = jax.random.PRNGKey(0)
    k_params, k_x1, k_x2 = jax.random.split(key, 3)

    params = init_params(k_params, n_vocab, embedding_dim, hidden_dim, n_target)
    prepared = prepare_params(params)                  # one-time pad + bf16 cast

    x1 = jax.random.randint(k_x1, (B, S1), 0, n_vocab, dtype=jnp.int32)
    x2 = jax.random.randint(k_x2, (B, S2), 0, n_vocab, dtype=jnp.int32)

    out = two_inputs_mlp_forward(x1, x2, prepared)
    out = jax.block_until_ready(out)

    ref = jax.block_until_ready(reference_forward(x1, x2, params))
    assert out.shape == (B, n_target)
    assert jnp.all(jnp.isfinite(out))
    # bf16 matmul operands (f32 accumulation / epilogue): loosened tolerance.
    assert jnp.allclose(out, ref, atol=5e-2, rtol=5e-2)

    print("KERNEL_OK")
</pallas_src>

<mosaic_0001>
module attributes {stable_mosaic.version = 11 : i64} {
  func.func @_two_input_mlp_kernel(%arg0: i32, %arg1: memref<32x32xbf16, #tpu.memory_space<vmem>>, %arg2: memref<32x128xbf16, #tpu.memory_space<vmem>>, %arg3: memref<1x128xf32, #tpu.memory_space<vmem>>, %arg4: memref<128x128xbf16, #tpu.memory_space<vmem>>, %arg5: memref<1x128xf32, #tpu.memory_space<vmem>>, %arg6: memref<128x128xbf16, #tpu.memory_space<vmem>>, %arg7: memref<128x128xbf16, #tpu.memory_space<vmem>>, %arg8: memref<1x128xf32, #tpu.memory_space<vmem>>, %arg9: memref<128x128xbf16, #tpu.memory_space<vmem>>, %arg10: memref<1x128xf32, #tpu.memory_space<vmem>>, %arg11: memref<16x128xbf16, #tpu.memory_space<vmem>>) attributes {dimension_semantics = [#tpu.dimension_semantics<parallel>], iteration_bounds = array<i64: 1>, scalar_prefetch = 0 : i64, scratch_operands = 0 : i64, tpu.core_type = #tpu.core_type<tc>, window_params = [{transform_indices = @transform_0, window_bounds = array<i64: 32, 32>}, {pipeline_mode = #tpu.pipeline_mode<synchronous>, transform_indices = @transform_1, window_bounds = array<i64: 32, 128>}, {pipeline_mode = #tpu.pipeline_mode<synchronous>, transform_indices = @transform_2, window_bounds = array<i64: 1, 128>}, {pipeline_mode = #tpu.pipeline_mode<synchronous>, transform_indices = @transform_3, window_bounds = array<i64: 128, 128>}, {pipeline_mode = #tpu.pipeline_mode<synchronous>, transform_indices = @transform_4, window_bounds = array<i64: 1, 128>}, {pipeline_mode = #tpu.pipeline_mode<synchronous>, transform_indices = @transform_5, window_bounds = array<i64: 128, 128>}, {pipeline_mode = #tpu.pipeline_mode<synchronous>, transform_indices = @transform_6, window_bounds = array<i64: 128, 128>}, {pipeline_mode = #tpu.pipeline_mode<synchronous>, transform_indices = @transform_7, window_bounds = array<i64: 1, 128>}, {pipeline_mode = #tpu.pipeline_mode<synchronous>, transform_indices = @transform_8, window_bounds = array<i64: 128, 128>}, {pipeline_mode = #tpu.pipeline_mode<synchronous>, transform_indices = @transform_9, window_bounds = array<i64: 1, 128>}, {transform_indices = @transform_10, window_bounds = array<i64: 16, 128>}]} {
    %c0 = arith.constant 0 : index
    %c0_0 = arith.constant 0 : index
    %0 = vector.load %arg1[%c0, %c0_0] : memref<32x32xbf16, #tpu.memory_space<vmem>>, vector<32x32xbf16>
    %c0_1 = arith.constant 0 : index
    %c0_2 = arith.constant 0 : index
    %1 = vector.load %arg2[%c0_1, %c0_2] : memref<32x128xbf16, #tpu.memory_space<vmem>>, vector<32x128xbf16>
    %cst = arith.constant dense<0.000000e+00> : vector<32x128xf32>
    %2 = tpu.matmul %0, %1, %cst {dimension_numbers = #tpu.dot_dimension_numbers<[1], [0], [0], [1], [0, 0, 1, 1], [], []>} : vector<32x32xbf16>, vector<32x128xbf16>, vector<32x128xf32> -> vector<32x128xf32>
    %c0_3 = arith.constant 0 : index
    %c0_4 = arith.constant 0 : index
    %3 = vector.load %arg3[%c0_3, %c0_4] : memref<1x128xf32, #tpu.memory_space<vmem>>, vector<1x128xf32>
    %4 = vector.broadcast %3 : vector<1x128xf32> to vector<32x128xf32>
    %5 = arith.addf %2, %4 : vector<32x128xf32>
    %6 = math.tanh %5 : vector<32x128xf32>
    %7 = arith.truncf %6 : vector<32x128xf32> to vector<32x128xbf16>
    %c0_5 = arith.constant 0 : index
    %c0_6 = arith.constant 0 : index
    %8 = vector.load %arg4[%c0_5, %c0_6] : memref<128x128xbf16, #tpu.memory_space<vmem>>, vector<128x128xbf16>
    %cst_7 = arith.constant dense<0.000000e+00> : vector<32x128xf32>
    %9 = tpu.matmul %7, %8, %cst_7 {dimension_numbers = #tpu.dot_dimension_numbers<[1], [0], [0], [1], [0, 0, 1, 1], [], []>} : vector<32x128xbf16>, vector<128x128xbf16>, vector<32x128xf32> -> vector<32x128xf32>
    %c0_8 = arith.constant 0 : index
    %c0_9 = arith.constant 0 : index
    %10 = vector.load %arg5[%c0_8, %c0_9] : memref<1x128xf32, #tpu.memory_space<vmem>>, vector<1x128xf32>
    %11 = vector.broadcast %10 : vector<1x128xf32> to vector<32x128xf32>
    %12 = arith.addf %9, %11 : vector<32x128xf32>
    %13 = math.tanh %12 : vector<32x128xf32>
    %14 = vector.extract_strided_slice %13 {offsets = [0, 0], sizes = [16, 128], strides = [1, 1]} : vector<32x128xf32> to vector<16x128xf32>
    %15 = arith.truncf %14 : vector<16x128xf32> to vector<16x128xbf16>
    %16 = vector.extract_strided_slice %13 {offsets = [16, 0], sizes = [16, 128], strides = [1, 1]} : vector<32x128xf32> to vector<16x128xf32>
    %17 = arith.truncf %16 : vector<16x128xf32> to vector<16x128xbf16>
    %c0_10 = arith.constant 0 : index
    %c0_11 = arith.constant 0 : index
    %18 = vector.load %arg6[%c0_10, %c0_11] : memref<128x128xbf16, #tpu.memory_space<vmem>>, vector<128x128xbf16>
    %cst_12 = arith.constant dense<0.000000e+00> : vector<16x128xf32>
    %19 = tpu.matmul %15, %18, %cst_12 {dimension_numbers = #tpu.dot_dimension_numbers<[1], [0], [0], [1], [0, 0, 1, 1], [], []>} : vector<16x128xbf16>, vector<128x128xbf16>, vector<16x128xf32> -> vector<16x128xf32>
    %c0_13 = arith.constant 0 : index
    %c0_14 = arith.constant 0 : index
    %20 = vector.load %arg7[%c0_13, %c0_14] : memref<128x128xbf16, #tpu.memory_space<vmem>>, vector<128x128xbf16>
    %cst_15 = arith.constant dense<0.000000e+00> : vector<16x128xf32>
    %21 = tpu.matmul %17, %20, %cst_15 {dimension_numbers = #tpu.dot_dimension_numbers<[1], [0], [0], [1], [0, 0, 1, 1], [], []>} : vector<16x128xbf16>, vector<128x128xbf16>, vector<16x128xf32> -> vector<16x128xf32>
    %22 = arith.addf %19, %21 : vector<16x128xf32>
    %c0_16 = arith.constant 0 : index
    %c0_17 = arith.constant 0 : index
    %23 = vector.load %arg8[%c0_16, %c0_17] : memref<1x128xf32, #tpu.memory_space<vmem>>, vector<1x128xf32>
    %24 = vector.broadcast %23 : vector<1x128xf32> to vector<16x128xf32>
    %25 = arith.addf %22, %24 : vector<16x128xf32>
    %26 = math.tanh %25 : vector<16x128xf32>
    %27 = arith.truncf %26 : vector<16x128xf32> to vector<16x128xbf16>
    %c0_18 = arith.constant 0 : index
    %c0_19 = arith.constant 0 : index
    %28 = vector.load %arg9[%c0_18, %c0_19] : memref<128x128xbf16, #tpu.memory_space<vmem>>, vector<128x128xbf16>
    %cst_20 = arith.constant dense<0.000000e+00> : vector<16x128xf32>
    %29 = tpu.matmul %27, %28, %cst_20 {dimension_numbers = #tpu.dot_dimension_numbers<[1], [0], [0], [1], [0, 0, 1, 1], [], []>} : vector<16x128xbf16>, vector<128x128xbf16>, vector<16x128xf32> -> vector<16x128xf32>
    %c0_21 = arith.constant 0 : index
    %c0_22 = arith.constant 0 : index
    %30 = vector.load %arg10[%c0_21, %c0_22] : memref<1x128xf32, #tpu.memory_space<vmem>>, vector<1x128xf32>
    %31 = vector.broadcast %30 : vector<1x128xf32> to vector<16x128xf32>
    %32 = arith.addf %29, %31 : vector<16x128xf32>
    %33 = arith.truncf %32 : vector<16x128xf32> to vector<16x128xbf16>
    %c0_23 = arith.constant 0 : index
    %c0_24 = arith.constant 0 : index
    %34 = vector.load %arg11[%c0_23, %c0_24] : memref<16x128xbf16, #tpu.memory_space<vmem>>, vector<16x128xbf16>
    tpu.vector_store %arg11[%c0_23, %c0_24], %33 {strides = array<i32>} : memref<16x128xbf16, #tpu.memory_space<vmem>>, vector<16x128xbf16>,
    return
  }
  func.func @transform_0(%arg0: i32) -> (i32, i32) {
    %c0_i32 = arith.constant 0 : i32
    %c0_i32_0 = arith.constant 0 : i32
    return %arg0, %c0_i32 : i32, i32
  }
  func.func @transform_1(%arg0: i32) -> (i32, i32) {
    %c0_i32 = arith.constant 0 : i32
    %c0_i32_0 = arith.constant 0 : i32
    %c0_i32_1 = arith.constant 0 : i32
    return %c0_i32, %c0_i32_0 : i32, i32
  }
  func.func @transform_2(%arg0: i32) -> (i32, i32) {
    %c0_i32 = arith.constant 0 : i32
    %c0_i32_0 = arith.constant 0 : i32
    %c0_i32_1 = arith.constant 0 : i32
    return %c0_i32, %c0_i32_0 : i32, i32
  }
  func.func @transform_3(%arg0: i32) -> (i32, i32) {
    %c0_i32 = arith.constant 0 : i32
    %c0_i32_0 = arith.constant 0 : i32
    %c0_i32_1 = arith.constant 0 : i32
    return %c0_i32, %c0_i32_0 : i32, i32
  }
  func.func @transform_4(%arg0: i32) -> (i32, i32) {
    %c0_i32 = arith.constant 0 : i32
    %c0_i32_0 = arith.constant 0 : i32
    %c0_i32_1 = arith.constant 0 : i32
    return %c0_i32, %c0_i32_0 : i32, i32
  }
  func.func @transform_5(%arg0: i32) -> (i32, i32) {
    %c0_i32 = arith.constant 0 : i32
    %c0_i32_0 = arith.constant 0 : i32
    %c0_i32_1 = arith.constant 0 : i32
    return %c0_i32, %c0_i32_0 : i32, i32
  }
  func.func @transform_6(%arg0: i32) -> (i32, i32) {
    %c0_i32 = arith.constant 0 : i32
    %c0_i32_0 = arith.constant 0 : i32
    %c0_i32_1 = arith.constant 0 : i32
    return %c0_i32, %c0_i32_0 : i32, i32
  }
  func.func @transform_7(%arg0: i32) -> (i32, i32) {
    %c0_i32 = arith.constant 0 : i32
    %c0_i32_0 = arith.constant 0 : i32
    %c0_i32_1 = arith.constant 0 : i32
    return %c0_i32, %c0_i32_0 : i32, i32
  }
  func.func @transform_8(%arg0: i32) -> (i32, i32) {
    %c0_i32 = arith.constant 0 : i32
    %c0_i32_0 = arith.constant 0 : i32
    %c0_i32_1 = arith.constant 0 : i32
    return %c0_i32, %c0_i32_0 : i32, i32
  }
  func.func @transform_9(%arg0: i32) -> (i32, i32) {
    %c0_i32 = arith.constant 0 : i32
    %c0_i32_0 = arith.constant 0 : i32
    %c0_i32_1 = arith.constant 0 : i32
    return %c0_i32, %c0_i32_0 : i32, i32
  }
  func.func @transform_10(%arg0: i32) -> (i32, i32) {
    %c0_i32 = arith.constant 0 : i32
    %c0_i32_0 = arith.constant 0 : i32
    return %arg0, %c0_i32 : i32, i32
  }
}

</mosaic_0001>

<llo_original>
// kernel: tpu_custom_call.1
$region0: #{tpu_custom_call.1}
  #allocation0 [shape = 'u32[]', space=smem, size = 0x4, offset = 0x4, fixed_abs, tag = 'smem constant byte address 0x4 - core index']
  #allocation1 [shape = 'u32[72,128]{1,0:T(1,128)}', space=vmem, size = 0x9000, scoped, tag = 'internal scratch']
  %s0 = inlined_call_operand.hbm [shape: bf16[32,32], index: 0, kind: input, shape index: {}]
  %s1 = inlined_call_operand.hbm [shape: bf16[32,128], index: 1, kind: input, shape index: {}]
  %s2 = inlined_call_operand.vmem [shape: f32[1,128], index: 2, kind: input, shape index: {}]
  %s3 = inlined_call_operand.hbm [shape: bf16[128,128], index: 3, kind: input, shape index: {}]
  %s4 = inlined_call_operand.vmem [shape: f32[1,128], index: 4, kind: input, shape index: {}]
  %s5 = inlined_call_operand.hbm [shape: bf16[128,128], index: 5, kind: input, shape index: {}]
  %s6 = inlined_call_operand.hbm [shape: bf16[128,128], index: 6, kind: input, shape index: {}]
  %s7 = inlined_call_operand.vmem [shape: f32[1,128], index: 7, kind: input, shape index: {}]
  %s8 = inlined_call_operand.hbm [shape: bf16[128,128], index: 8, kind: input, shape index: {}]
  %s9 = inlined_call_operand.vmem [shape: f32[1,128], index: 9, kind: input, shape index: {}]
  %s10 = inlined_call_operand.hbm [shape: bf16[16,128], index: 10, kind: output, shape index: {}]
  %s11 = sld [smem:[#allocation0]]
  $region74: #{tpu_custom_call.1} parent=0
    _
  %s13 = ssub.s32 1, %s11
  %s14 = scalar_select 0, %s13, %s11
  $region1: #{tpu_custom_call.1} parent=0
    #allocation2 [shape = 'u8[8192]{0}', space=vmem, size = 0x2000, scoped, tag = 'input window, operand 0, single buffered']
    #allocation3 [shape = 's32[1]{0}', space=sflag, size = 0x4, scoped, tag = 'scoped memory for tpu_custom_call.1']
    #allocation4 [shape = 's32[1]{0}', space=sflag, size = 0x4, scoped, tag = 'scoped memory for tpu_custom_call.1']
    #allocation5 [shape = 'u8[8192]{0}', space=vmem, size = 0x2000, scoped, tag = 'input window, operand 1, single buffered']
    #allocation6 [shape = 's32[1]{0}', space=sflag, size = 0x4, scoped, tag = 'scoped memory for tpu_custom_call.1']
    #allocation7 [shape = 'u8[32768]{0}', space=vmem, size = 0x8000, scoped, tag = 'input window, operand 3, single buffered']
    #allocation8 [shape = 'u8[32768]{0}', space=vmem, size = 0x8000, scoped, tag = 'input window, operand 5, single buffered']
    #allocation9 [shape = 's32[1]{0}', space=sflag, size = 0x4, scoped, tag = 'scoped memory for tpu_custom_call.1']
    #allocation10 [shape = 'u8[32768]{0}', space=vmem, size = 0x8000, scoped, tag = 'input window, operand 6, single buffered']
    #allocation11 [shape = 'u8[32768]{0}', space=vmem, size = 0x8000, scoped, tag = 'input window, operand 8, single buffered']
    #allocation12 [shape = 's32[1]{0}', space=sflag, size = 0x4, scoped, tag = 'scoped memory for tpu_custom_call.1']
    #allocation13 [shape = 'u8[4096]{0}', space=vmem, size = 0x1000, scoped, tag = 'output window, operand 0, single buffered']
    %15 = vsyncpa [#allocation3], 0
    %16 = vsyncpa [#allocation6], 0
    %17 = vsyncpa [#allocation9], 0
    %18 = vsyncpa [#allocation12], 0
    %19 = vsyncpa [#allocation4], 0
    // Predicated region
    $region2: #{tpu_custom_call.1} parent=1 // pred_check
      _
    $region3: #{tpu_custom_call.1} parent=1 // pred_check_branch
      %21 = sbr.rel (0) target = $region5
    $region4: #{tpu_custom_call.1} parent=1 // pred_region
      %23 = vsyncadd [#allocation3], 0
      %s24 = sshll.u32 %s0, 4
      %s25 = int_to_ptr.hbm [resolvable:$true] %s24
      %s26 = sshll.u32 [#allocation2], 4
      %s27 = int_to_ptr.vmem [resolvable:$true] %s26
      %32 = dma.hbm_to_vmem [thread:$0]  %s25, 256, %s27, [#allocation3], 64, 64, 4
    $region5: #{tpu_custom_call.1} parent=1 // pred_fallthru
      _
    // Predicated region
    $region6: #{tpu_custom_call.1} parent=1 // pred_check
      _
    $region7: #{tpu_custom_call.1} parent=1 // pred_check_branch
      %34 = sbr.rel (0) target = $region9
    $region8: #{tpu_custom_call.1} parent=1 // pred_region
      %36 = vsyncadd [#allocation6], 0
      %s37 = sshll.u32 %s1, 4
      %s38 = int_to_ptr.hbm [resolvable:$true] %s37
      %s39 = sshll.u32 [#allocation5], 4
      %s40 = int_to_ptr.vmem [resolvable:$true] %s39
      %45 = dma.hbm_to_vmem [thread:$0]  %s38, 256, %s40, [#allocation6], 64, 64, 4
    $region9: #{tpu_custom_call.1} parent=1 // pred_fallthru
      _
    // Predicated region
    $region10: #{tpu_custom_call.1} parent=1 // pred_check
      _
    $region11: #{tpu_custom_call.1} parent=1 // pred_check_branch
      %47 = sbr.rel (0) target = $region13
    $region12: #{tpu_custom_call.1} parent=1 // pred_region
      _
    $region13: #{tpu_custom_call.1} parent=1 // pred_fallthru
      _
    // Predicated region
    $region14: #{tpu_custom_call.1} parent=1 // pred_check
      _
    $region15: #{tpu_custom_call.1} parent=1 // pred_check_branch
      %49 = sbr.rel (0) target = $region17
    $region16: #{tpu_custom_call.1} parent=1 // pred_region
      %51 = vsyncadd [#allocation6], 0
      %s52 = sshll.u32 %s3, 4
      %s53 = int_to_ptr.hbm [resolvable:$true] %s52
      %s54 = sshll.u32 [#allocation7], 4
      %s55 = int_to_ptr.vmem [resolvable:$true] %s54
      %60 = dma.hbm_to_vmem [thread:$0]  %s53, 1024, %s55, [#allocation6], 64, 64, 4
    $region17: #{tpu_custom_call.1} parent=1 // pred_fallthru
      _
    // Predicated region
    $region18: #{tpu_custom_call.1} parent=1 // pred_check
      _
    $region19: #{tpu_custom_call.1} parent=1 // pred_check_branch
      %62 = sbr.rel (0) target = $region21
    $region20: #{tpu_custom_call.1} parent=1 // pred_region
      _
    $region21: #{tpu_custom_call.1} parent=1 // pred_fallthru
      _
    // Predicated region
    $region22: #{tpu_custom_call.1} parent=1 // pred_check
      _
    $region23: #{tpu_custom_call.1} parent=1 // pred_check_branch
      %64 = sbr.rel (0) target = $region25
    $region24: #{tpu_custom_call.1} parent=1 // pred_region
      %66 = vsyncadd [#allocation9], 0
      %s67 = sshll.u32 %s5, 4
      %s68 = int_to_ptr.hbm [resolvable:$true] %s67
      %s69 = sshll.u32 [#allocation8], 4
      %s70 = int_to_ptr.vmem [resolvable:$true] %s69
      %75 = dma.hbm_to_vmem [thread:$0]  %s68, 1024, %s70, [#allocation9], 64, 64, 4
    $region25: #{tpu_custom_call.1} parent=1 // pred_fallthru
      _
    // Predicated region
    $region26: #{tpu_custom_call.1} parent=1 // pred_check
      _
    $region27: #{tpu_custom_call.1} parent=1 // pred_check_branch
      %77 = sbr.rel (0) target = $region29
    $region28: #{tpu_custom_call.1} parent=1 // pred_region
      %79 = vsyncadd [#allocation9], 0
      %s80 = sshll.u32 %s6, 4
      %s81 = int_to_ptr.hbm [resolvable:$true] %s80
      %s82 = sshll.u32 [#allocation10], 4
      %s83 = int_to_ptr.vmem [resolvable:$true] %s82
      %88 = dma.hbm_to_vmem [thread:$0]  %s81, 1024, %s83, [#allocation9], 64, 64, 4
    $region29: #{tpu_custom_call.1} parent=1 // pred_fallthru
      _
    // Predicated region
    $region30: #{tpu_custom_call.1} parent=1 // pred_check
      _
    $region31: #{tpu_custom_call.1} parent=1 // pred_check_branch
      %90 = sbr.rel (0) target = $region33
    $region32: #{tpu_custom_call.1} parent=1 // pred_region
      _
    $region33: #{tpu_custom_call.1} parent=1 // pred_fallthru
      _
    // Predicated region
    $region34: #{tpu_custom_call.1} parent=1 // pred_check
      _
    $region35: #{tpu_custom_call.1} parent=1 // pred_check_branch
      %92 = sbr.rel (0) target = $region37
    $region36: #{tpu_custom_call.1} parent=1 // pred_region
      %94 = vsyncadd [#allocation12], 0
      %s95 = sshll.u32 %s8, 4
      %s96 = int_to_ptr.hbm [resolvable:$true] %s95
      %s97 = sshll.u32 [#allocation11], 4
      %s98 = int_to_ptr.vmem [resolvable:$true] %s97
      %103 = dma.hbm_to_vmem [thread:$0]  %s96, 1024, %s98, [#allocation12], 64, 64, 4
    $region37: #{tpu_custom_call.1} parent=1 // pred_fallthru
      _
    // Predicated region
    $region38: #{tpu_custom_call.1} parent=1 // pred_check
      _
    $region39: #{tpu_custom_call.1} parent=1 // pred_check_branch
      %105 = sbr.rel (0) target = $region41
    $region40: #{tpu_custom_call.1} parent=1 // pred_region
      _
    $region41: #{tpu_custom_call.1} parent=1 // pred_fallthru
      _
    // Predicated region
    $region42: #{tpu_custom_call.1} parent=1 // pred_check
      _
    $region43: #{tpu_custom_call.1} parent=1 // pred_check_branch
      %107 = sbr.rel (0) target = $region45
    $region44: #{tpu_custom_call.1} parent=1 // pred_region
      %109 = dma.done [#allocation3], 256
    $region45: #{tpu_custom_call.1} parent=1 // pred_fallthru
      _
    // Predicated region
    $region46: #{tpu_custom_call.1} parent=1 // pred_check
      _
    $region47: #{tpu_custom_call.1} parent=1 // pred_check_branch
      %111 = sbr.rel (0) target = $region49
    $region48: #{tpu_custom_call.1} parent=1 // pred_region
      %113 = dma.done [#allocation6], 256
    $region49: #{tpu_custom_call.1} parent=1 // pred_fallthru
      _
    // Predicated region
    $region50: #{tpu_custom_call.1} parent=1 // pred_check
      _
    $region51: #{tpu_custom_call.1} parent=1 // pred_check_branch
      %115 = sbr.rel (0) target = $region53
    $region52: #{tpu_custom_call.1} parent=1 // pred_region
      %117 = dma.done [#allocation6], 1024
    $region53: #{tpu_custom_call.1} parent=1 // pred_fallthru
      _
    // Predicated region
    $region54: #{tpu_custom_call.1} parent=1 // pred_check
      _
    $region55: #{tpu_custom_call.1} parent=1 // pred_check_branch
      %119 = sbr.rel (0) target = $region57
    $region56: #{tpu_custom_call.1} parent=1 // pred_region
      %121 = dma.done [#allocation9], 1024
    $region57: #{tpu_custom_call.1} parent=1 // pred_fallthru
      _
    // Predicated region
    $region58: #{tpu_custom_call.1} parent=1 // pred_check
      _
    $region59: #{tpu_custom_call.1} parent=1 // pred_check_branch
      %123 = sbr.rel (0) target = $region61
    $region60: #{tpu_custom_call.1} parent=1 // pred_region
      %125 = dma.done [#allocation9], 1024
    $region61: #{tpu_custom_call.1} parent=1 // pred_fallthru
      _
    // Predicated region
    $region62: #{tpu_custom_call.1} parent=1 // pred_check
      _
    $region63: #{tpu_custom_call.1} parent=1 // pred_check_branch
      %127 = sbr.rel (0) target = $region65
    $region64: #{tpu_custom_call.1} parent=1 // pred_region
      %129 = dma.done [#allocation12], 1024
    $region65: #{tpu_custom_call.1} parent=1 // pred_fallthru
      _
    %v131 = vld [vmem:[#allocation2] sm:$0xf]
    %v132 = vld [vmem:[#allocation2 + $0x4] sm:$0xf]
    %v133 = vld [vmem:[#allocation2 + $0x8] sm:$0xf]
    %v134 = vld [vmem:[#allocation2 + $0xc] sm:$0xf]
    %v135 = vld [vmem:[#allocation5] sm:$0xf]
    %v136 = vld [vmem:[#allocation5 + $0x4] sm:$0xf]
    %v137 = vld [vmem:[#allocation5 + $0x8] sm:$0xf]
    %v138 = vld [vmem:[#allocation5 + $0xc] sm:$0xf]
    %v139 = vld [vmem:[%s2] sm:$0x1]
    %v141 = vperm.slane %v139, 0
    %v147 = vunpack.c.l.b16 %v131
    %v148 = vunpack.c.l.b16 %v132
    %v149 = vunpack.c.l.b16 %v133
    %v150 = vunpack.c.l.b16 %v134
    %v151 = vpack.c.b16 %v148, %v147
    %v152 = vpack.c.b16 %v150, %v149
    %v157 = vunpack.c.l.b16 %v135
    %v158 = vunpack.c.l.b16 %v136
    %v159 = vunpack.c.l.b16 %v137
    %v160 = vunpack.c.l.b16 %v138
    %v161 = vpack.c.b16 %v158, %v157
    %v162 = vpack.c.b16 %v160, %v159
    %vm165 = vcmask 261120
    %v167 = vsel %vm165, %v151, 0
    %v170 = vsel %vm165, %v152, 0
    %172 = vmatpush.bf16.msra.mxu0 0
    %173 = vmatpush.bf16.msra.mxu0 0
    %174 = vmatpush.bf16.msra.mxu0 0
    %175 = vmatpush.bf16.msra.mxu0 0
    %176 = vmatpush.bf16.msra.mxu0 0
    %177 = vmatpush.bf16.msra.mxu0 0
    %178 = vmatpush.bf16.msra.mxu0 %v162
    %179 = vmatpush.bf16.msra.mxu0 %v161
    %180 = vmatmul.bf16.gmra.mxu0 %v167
    %v181 = vpop.f32.mrf.mxu0
    %v182 = vadd.f32 %v141, %v181
    %v183 = vpop.f32.mrf.mxu0
    %v184 = vadd.f32 %v141, %v183
    %185 = vmatmul.bf16.gmra.mxu0 %v170
    %v186 = vpop.f32.mrf.mxu0
    %v187 = vadd.f32 %v141, %v186
    %v188 = vpop.f32.mrf.mxu0
    %v189 = vadd.f32 %v141, %v188
    %190 = vdwg.mxu0
    %v191 = vtanh.pop %v182
    %v192 = vtanh.pop %v184
    %v193 = vtanh.pop %v187
    %v194 = vtanh.pop %v189
    %v195 = vpack.c.bf16 %v192, %v191
    %v196 = vpack.c.bf16 %v194, %v193
    %v197 = vld [vmem:[#allocation7] sm:$0xf]
    %v198 = vld [vmem:[#allocation7 + $0x4] sm:$0xf]
    %v199 = vld [vmem:[#allocation7 + $0x8] sm:$0xf]
    %v200 = vld [vmem:[#allocation7 + $0xc] sm:$0xf]
    %v201 = vld [vmem:[#allocation7 + $0x10] sm:$0xf]
    %v202 = vld [vmem:[#allocation7 + $0x14] sm:$0xf]
    %v203 = vld [vmem:[#allocation7 + $0x18] sm:$0xf]
    %v204 = vld [vmem:[#allocation7 + $0x1c] sm:$0xf]
    %v205 = vld [vmem:[#allocation7 + $0x20] sm:$0xf]
    %v206 = vld [vmem:[#allocation7 + $0x24] sm:$0xf]
    %v207 = vld [vmem:[#allocation7 + $0x28] sm:$0xf]
    %v208 = vld [vmem:[#allocation7 + $0x2c] sm:$0xf]
    %v209 = vld [vmem:[#allocation7 + $0x30] sm:$0xf]
    %v210 = vld [vmem:[#allocation7 + $0x34] sm:$0xf]
    %v211 = vld [vmem:[#allocation7 + $0x38] sm:$0xf]
    %v212 = vld [vmem:[#allocation7 + $0x3c] sm:$0xf]
    %v213 = vld [vmem:[%s4] sm:$0x1]
    %v215 = vperm.slane %v213, 0
    %v233 = vunpack.c.l.b16 %v197
    %v234 = vunpack.c.l.b16 %v198
    %v235 = vunpack.c.l.b16 %v199
    %v236 = vunpack.c.l.b16 %v200
    %v237 = vunpack.c.l.b16 %v201
    %v238 = vunpack.c.l.b16 %v202
    %v239 = vunpack.c.l.b16 %v203
    %v240 = vunpack.c.l.b16 %v204
    %v241 = vunpack.c.l.b16 %v205
    %v242 = vunpack.c.l.b16 %v206
    %v243 = vunpack.c.l.b16 %v207
    %v244 = vunpack.c.l.b16 %v208
    %v245 = vunpack.c.l.b16 %v209
    %v246 = vunpack.c.l.b16 %v210
    %v247 = vunpack.c.l.b16 %v211
    %v248 = vunpack.c.l.b16 %v212
    %v249 = vpack.c.b16 %v234, %v233
    %v250 = vpack.c.b16 %v236, %v235
    %v251 = vpack.c.b16 %v238, %v237
    %v252 = vpack.c.b16 %v240, %v239
    %v253 = vpack.c.b16 %v242, %v241
    %v254 = vpack.c.b16 %v244, %v243
    %v255 = vpack.c.b16 %v246, %v245
    %v256 = vpack.c.b16 %v248, %v247
    %265 = vmatpush.bf16.msra.mxu0 %v256
    %266 = vmatpush.bf16.msra.mxu0 %v255
    %267 = vmatpush.bf16.msra.mxu0 %v254
    %268 = vmatpush.bf16.msra.mxu0 %v253
    %269 = vmatpush.bf16.msra.mxu0 %v252
    %270 = vmatpush.bf16.msra.mxu0 %v251
    %271 = vmatpush.bf16.msra.mxu0 %v250
    %272 = vmatpush.bf16.msra.mxu0 %v249
    %273 = vmatmul.bf16.gmra.mxu0 %v195
    %v274 = vpop.f32.mrf.mxu0
    %v275 = vadd.f32 %v215, %v274
    %v276 = vpop.f32.mrf.mxu0
    %v277 = vadd.f32 %v215, %v276
    %278 = vmatmul.bf16.gmra.mxu0 %v196
    %v279 = vpop.f32.mrf.mxu0
    %v280 = vadd.f32 %v215, %v279
    %v281 = vpop.f32.mrf.mxu0
    %v282 = vadd.f32 %v215, %v281
    %283 = vdwg.mxu0
    %v284 = vtanh.pop %v275
    %v285 = vtanh.pop %v277
    %v286 = vtanh.pop %v280
    %v287 = vtanh.pop %v282
    %v288 = vpack.c.bf16 %v285, %v284
    %v289 = vpack.c.bf16 %v287, %v286
    %v290 = vld [vmem:[#allocation8] sm:$0xf]
    %v291 = vld [vmem:[#allocation8 + $0x4] sm:$0xf]
    %v292 = vld [vmem:[#allocation8 + $0x8] sm:$0xf]
    %v293 = vld [vmem:[#allocation8 + $0xc] sm:$0xf]
    %v294 = vld [vmem:[#allocation8 + $0x10] sm:$0xf]
    %v295 = vld [vmem:[#allocation8 + $0x14] sm:$0xf]
    %v296 = vld [vmem:[#allocation8 + $0x18] sm:$0xf]
    %v297 = vld [vmem:[#allocation8 + $0x1c] sm:$0xf]
    %v298 = vld [vmem:[#allocation8 + $0x20] sm:$0xf]
    %v299 = vld [vmem:[#allocation8 + $0x24] sm:$0xf]
    %v300 = vld [vmem:[#allocation8 + $0x28] sm:$0xf]
    %v301 = vld [vmem:[#allocation8 + $0x2c] sm:$0xf]
    %v302 = vld [vmem:[#allocation8 + $0x30] sm:$0xf]
    %v303 = vld [vmem:[#allocation8 + $0x34] sm:$0xf]
    %v304 = vld [vmem:[#allocation8 + $0x38] sm:$0xf]
    %v305 = vld [vmem:[#allocation8 + $0x3c] sm:$0xf]
    %v306 = vld [vmem:[#allocation10] sm:$0xf]
    %v307 = vld [vmem:[#allocation10 + $0x4] sm:$0xf]
    %v308 = vld [vmem:[#allocation10 + $0x8] sm:$0xf]
    %v309 = vld [vmem:[#allocation10 + $0xc] sm:$0xf]
    %v310 = vld [vmem:[#allocation10 + $0x10] sm:$0xf]
    %v311 = vld [vmem:[#allocation10 + $0x14] sm:$0xf]
    %v312 = vld [vmem:[#allocation10 + $0x18] sm:$0xf]
    %v313 = vld [vmem:[#allocation10 + $0x1c] sm:$0xf]
    %v314 = vld [vmem:[#allocation10 + $0x20] sm:$0xf]
    %v315 = vld [vmem:[#allocation10 + $0x24] sm:$0xf]
    %v316 = vld [vmem:[#allocation10 + $0x28] sm:$0xf]
    %v317 = vld [vmem:[#allocation10 + $0x2c] sm:$0xf]
    %v318 = vld [vmem:[#allocation10 + $0x30] sm:$0xf]
    %v319 = vld [vmem:[#allocation10 + $0x34] sm:$0xf]
    %v320 = vld [vmem:[#allocation10 + $0x38] sm:$0xf]
    %v321 = vld [vmem:[#allocation10 + $0x3c] sm:$0xf]
    %v338 = vunpack.c.l.b16 %v306
    %v339 = vunpack.c.l.b16 %v307
    %v340 = vunpack.c.l.b16 %v308
    %v341 = vunpack.c.l.b16 %v309
    %v342 = vunpack.c.l.b16 %v310
    %v343 = vunpack.c.l.b16 %v311
    %v344 = vunpack.c.l.b16 %v312
    %v345 = vunpack.c.l.b16 %v313
    %v346 = vunpack.c.l.b16 %v314
    %v347 = vunpack.c.l.b16 %v315
    %v348 = vunpack.c.l.b16 %v316
    %v349 = vunpack.c.l.b16 %v317
    %v350 = vunpack.c.l.b16 %v318
    %v351 = vunpack.c.l.b16 %v319
    %v352 = vunpack.c.l.b16 %v320
    %v353 = vunpack.c.l.b16 %v321
    %v354 = vpack.c.b16 %v339, %v338
    %v355 = vpack.c.b16 %v341, %v340
    %v356 = vpack.c.b16 %v343, %v342
    %v357 = vpack.c.b16 %v345, %v344
    %v358 = vpack.c.b16 %v347, %v346
    %v359 = vpack.c.b16 %v349, %v348
    %v360 = vpack.c.b16 %v351, %v350
    %v361 = vpack.c.b16 %v353, %v352
    %370 = vmatpush.bf16.msra.mxu0 %v361
    %371 = vmatpush.bf16.msra.mxu0 %v360
    %372 = vmatpush.bf16.msra.mxu0 %v359
    %373 = vmatpush.bf16.msra.mxu0 %v358
    %374 = vmatpush.bf16.msra.mxu0 %v357
    %375 = vmatpush.bf16.msra.mxu0 %v356
    %376 = vmatpush.bf16.msra.mxu0 %v355
    %377 = vmatpush.bf16.msra.mxu0 %v354
    %378 = vmatmul.bf16.gmra.mxu0 %v289
    %v379 = vpop.f32.mrf.mxu0
    %v380 = vadd.f32 0.0, %v379
    %v381 = vpop.f32.mrf.mxu0
    %v382 = vadd.f32 0.0, %v381
    %383 = vdwg.mxu0
    %v400 = vunpack.c.l.b16 %v290
    %v401 = vunpack.c.l.b16 %v291
    %v402 = vunpack.c.l.b16 %v292
    %v403 = vunpack.c.l.b16 %v293
    %v404 = vunpack.c.l.b16 %v294
    %v405 = vunpack.c.l.b16 %v295
    %v406 = vunpack.c.l.b16 %v296
    %v407 = vunpack.c.l.b16 %v297
    %v408 = vunpack.c.l.b16 %v298
    %v409 = vunpack.c.l.b16 %v299
    %v410 = vunpack.c.l.b16 %v300
    %v411 = vunpack.c.l.b16 %v301
    %v412 = vunpack.c.l.b16 %v302
    %v413 = vunpack.c.l.b16 %v303
    %v414 = vunpack.c.l.b16 %v304
    %v415 = vunpack.c.l.b16 %v305
    %v416 = vpack.c.b16 %v401, %v400
    %v417 = vpack.c.b16 %v403, %v402
    %v418 = vpack.c.b16 %v405, %v404
    %v419 = vpack.c.b16 %v407, %v406
    %v420 = vpack.c.b16 %v409, %v408
    %v421 = vpack.c.b16 %v411, %v410
    %v422 = vpack.c.b16 %v413, %v412
    %v423 = vpack.c.b16 %v415, %v414
    %432 = vmatpush.bf16.msra.mxu0 %v423
    %433 = vmatpush.bf16.msra.mxu0 %v422
    %434 = vmatpush.bf16.msra.mxu0 %v421
    %435 = vmatpush.bf16.msra.mxu0 %v420
    %436 = vmatpush.bf16.msra.mxu0 %v419
    %437 = vmatpush.bf16.msra.mxu0 %v418
    %438 = vmatpush.bf16.msra.mxu0 %v417
    %439 = vmatpush.bf16.msra.mxu0 %v416
    %440 = vmatmul.bf16.gmra.mxu0 %v288
    %v441 = vpop.f32.mrf.mxu0
    %v442 = vadd.f32 %v380, %v441
    %v443 = vpop.f32.mrf.mxu0
    %v444 = vadd.f32 %v382, %v443
    %445 = vdwg.mxu0
    %v446 = vld [vmem:[%s7] sm:$0x1]
    %v448 = vperm.slane %v446, 0
    %v450 = vadd.f32 %v442, %v448
    %v451 = vadd.f32 %v444, %v448
    %v452 = vtanh.pop %v450
    %v453 = vtanh.pop %v451
    %v454 = vpack.c.bf16 %v453, %v452
    %v455 = vld [vmem:[#allocation11] sm:$0xf]
    %v456 = vld [vmem:[#allocation11 + $0x4] sm:$0xf]
    %v457 = vld [vmem:[#allocation11 + $0x8] sm:$0xf]
    %v458 = vld [vmem:[#allocation11 + $0xc] sm:$0xf]
    %v459 = vld [vmem:[#allocation11 + $0x10] sm:$0xf]
    %v460 = vld [vmem:[#allocation11 + $0x14] sm:$0xf]
    %v461 = vld [vmem:[#allocation11 + $0x18] sm:$0xf]
    %v462 = vld [vmem:[#allocation11 + $0x1c] sm:$0xf]
    %v463 = vld [vmem:[#allocation11 + $0x20] sm:$0xf]
    %v464 = vld [vmem:[#allocation11 + $0x24] sm:$0xf]
    %v465 = vld [vmem:[#allocation11 + $0x28] sm:$0xf]
    %v466 = vld [vmem:[#allocation11 + $0x2c] sm:$0xf]
    %v467 = vld [vmem:[#allocation11 + $0x30] sm:$0xf]
    %v468 = vld [vmem:[#allocation11 + $0x34] sm:$0xf]
    %v469 = vld [vmem:[#allocation11 + $0x38] sm:$0xf]
    %v470 = vld [vmem:[#allocation11 + $0x3c] sm:$0xf]
    %v471 = vld [vmem:[%s9] sm:$0x1]
    %v473 = vperm.slane %v471, 0
    %v491 = vunpack.c.l.b16 %v455
    %v492 = vunpack.c.l.b16 %v456
    %v493 = vunpack.c.l.b16 %v457
    %v494 = vunpack.c.l.b16 %v458
    %v495 = vunpack.c.l.b16 %v459
    %v496 = vunpack.c.l.b16 %v460
    %v497 = vunpack.c.l.b16 %v461
    %v498 = vunpack.c.l.b16 %v462
    %v499 = vunpack.c.l.b16 %v463
    %v500 = vunpack.c.l.b16 %v464
    %v501 = vunpack.c.l.b16 %v465
    %v502 = vunpack.c.l.b16 %v466
    %v503 = vunpack.c.l.b16 %v467
    %v504 = vunpack.c.l.b16 %v468
    %v505 = vunpack.c.l.b16 %v469
    %v506 = vunpack.c.l.b16 %v470
    %v507 = vpack.c.b16 %v492, %v491
    %v508 = vpack.c.b16 %v494, %v493
    %v509 = vpack.c.b16 %v496, %v495
    %v510 = vpack.c.b16 %v498, %v497
    %v511 = vpack.c.b16 %v500, %v499
    %v512 = vpack.c.b16 %v502, %v501
    %v513 = vpack.c.b16 %v504, %v503
    %v514 = vpack.c.b16 %v506, %v505
    %523 = vmatpush.bf16.msra.mxu0 %v514
    %524 = vmatpush.bf16.msra.mxu0 %v513
    %525 = vmatpush.bf16.msra.mxu0 %v512
    %526 = vmatpush.bf16.msra.mxu0 %v511
    %527 = vmatpush.bf16.msra.mxu0 %v510
    %528 = vmatpush.bf16.msra.mxu0 %v509
    %529 = vmatpush.bf16.msra.mxu0 %v508
    %530 = vmatpush.bf16.msra.mxu0 %v507
    %531 = vmatmul.bf16.gmra.mxu0 %v454
    %v532 = vpop.f32.mrf.mxu0
    %v533 = vadd.f32 %v473, %v532
    %v534 = vpop.f32.mrf.mxu0
    %v535 = vadd.f32 %v473, %v534
    %536 = vdwg.mxu0
    %v537 = vpack.c.bf16 %v533, %v533
    %v538 = vpack.c.bf16 %v535, %v535
    %539 = vst [vmem:[#allocation13] sm:$0xf] %v537
    %540 = vst [vmem:[#allocation13 + $0x4] sm:$0xf] %v538
    // Predicated region
    $region66: #{tpu_custom_call.1} parent=1 // pred_check
      _
    $region67: #{tpu_custom_call.1} parent=1 // pred_check_branch
      %542 = sbr.rel (0) target = $region69
    $region68: #{tpu_custom_call.1} parent=1 // pred_region
      %544 = vsyncadd [#allocation4], 0
      %s545 = sshll.u32 [#allocation13], 4
      %s546 = int_to_ptr.vmem [resolvable:$true] %s545
      %s547 = sshll.u32 %s10, 4
      %s548 = int_to_ptr.hbm [resolvable:$true] %s547
      %553 = dma.vmem_to_hbm [thread:$0]  %s546, 128, %s548, [#allocation4], 64, 64, 4
    $region69: #{tpu_custom_call.1} parent=1 // pred_fallthru
      _
    // Predicated region
    $region70: #{tpu_custom_call.1} parent=1 // pred_check
      _
    $region71: #{tpu_custom_call.1} parent=1 // pred_check_branch
      %555 = sbr.rel (0) target = $region73
    $region72: #{tpu_custom_call.1} parent=1 // pred_region
      %557 = dma.done [#allocation4], 128
    $region73: #{tpu_custom_call.1} parent=1 // pred_fallthru
      _
    %558 = vsyncpa [#allocation3], 1
    %559 = vsyncpa [#allocation6], 1
    %560 = vsyncpa [#allocation9], 1
    %561 = vsyncpa [#allocation12], 1
    %562 = vsyncpa [#allocation4], 1

</llo_original>
